<compile_context>
chip_gen: v7x
topology: tpu7x:2x2x1
jax: 0.10.0
libtpu: 0.0.40
codegen_flags: <defaults>
</compile_context>

<pallas_src>
import functools

import jax
import jax.numpy as jnp
from jax.experimental import pallas as pl
from jax.experimental.pallas import tpu as pltpu


def _ema_kernel(x_ref, shadow_ref, out_ref, *, mu):
    # new_average = mu * x + (1 - mu) * shadow   (elementwise, VPU)
    out_ref[...] = mu * x_ref[...] + (1.0 - mu) * shadow_ref[...]


def _pick_block_rows(rows_raw, itemsize, lanes, target_block_bytes):
    """Pick a sublane-aligned block row count sized for ~target_block_bytes."""
    # Native sublane tile: 8 rows for f32, 16 for bf16, 32 for int8/fp8.
    sub = max(8, 32 // itemsize)
    bytes_per_row = lanes * itemsize
    if rows_raw >= 2 * sub:
        # Biggest multiple of `sub` rows fitting the per-block byte target ...
        block_rows = max(sub, (target_block_bytes // bytes_per_row) // sub * sub)
        # ... but keep the grid at >= 2 steps so v7x's two TensorCores both
        # get work under dimension_semantics=("parallel",).
        block_rows = min(block_rows, max(sub, (rows_raw // 2) // sub * sub))
    else:
        # Tiny tensor: a single (padded) block.
        block_rows = ((rows_raw + sub - 1) // sub) * sub
    return block_rows


@functools.partial(jax.jit, static_argnames=("mu", "lanes", "target_block_bytes"))
def ema_update(x, shadow, mu, *, lanes=1024, target_block_bytes=2 << 20):
    """Compute mu*x + (1-mu)*shadow with a Pallas TPU kernel (any shape)."""
    assert x.shape == shadow.shape and x.dtype == shadow.dtype
    orig_shape = x.shape
    dtype = x.dtype
    total = x.size
    itemsize = jnp.dtype(dtype).itemsize

    rows_raw = max(1, -(-total // lanes))
    block_rows = _pick_block_rows(rows_raw, itemsize, lanes, target_block_bytes)
    num_blocks = -(-rows_raw // block_rows)
    rows = num_blocks * block_rows
    padded_total = rows * lanes
    pad = padded_total - total

    xf = x.reshape(-1)
    sf = shadow.reshape(-1)
    if pad:
        xf = jnp.pad(xf, (0, pad))
        sf = jnp.pad(sf, (0, pad))
    x2 = xf.reshape(rows, lanes)
    s2 = sf.reshape(rows, lanes)

    kernel = functools.partial(_ema_kernel, mu=float(mu))
    out2 = pl.pallas_call(
        kernel,
        out_shape=jax.ShapeDtypeStruct((rows, lanes), dtype),
        grid=(num_blocks,),
        in_specs=[
            pl.BlockSpec((block_rows, lanes), lambda i: (i, 0)),
            pl.BlockSpec((block_rows, lanes), lambda i: (i, 0)),
        ],
        out_specs=pl.BlockSpec((block_rows, lanes), lambda i: (i, 0)),
        # The EMA result immediately replaces the shadow buffer; alias it so
        # XLA can reuse the HBM allocation instead of making a fresh output.
        input_output_aliases={1: 0},
        compiler_params=pltpu.CompilerParams(
            dimension_semantics=("parallel",),
            # 3 arrays x 2 pipeline buffers x <=2 MiB blocks stays well under
            # this budget on v5e (16 MiB default), v6e (128 MiB) and v7x (64 MiB).
            vmem_limit_bytes=48 << 20,
        ),
    )(x2, s2)

    out_flat = out2.reshape(-1)
    if pad:
        out_flat = out_flat[:total]
    return out_flat.reshape(orig_shape)


class EMA:
    """JAX/Pallas port of the PyTorch EMA module.

    forward(name, x) -> mu * x + (1 - mu) * shadow[name]; the shadow buffer
    is updated functionally (stored back into the Python-side dict).
    """

    def __init__(self, mu):
        self.mu = mu
        self.shadow = {}

    def register(self, name, val):
        self.shadow[name] = jnp.array(val)  # .clone() equivalent

    def forward(self, name, x):
        assert name in self.shadow
        new_average = ema_update(x, self.shadow[name], self.mu)
        self.shadow[name] = new_average  # arrays are immutable => clone-safe
        return new_average

    __call__ = forward


if __name__ == "__main__":
    key = jax.random.PRNGKey(0)
    k_x, k_s, k_x2, k_s2, k_x3, k_s3 = jax.random.split(key, 6)
    mu = 0.9

    # 1) Small NCHW-shaped example: batch=2, channels=4, spatial=16x16.
    x = jax.random.normal(k_x, (2, 4, 16, 16), dtype=jnp.float32)
    shadow_init = jax.random.normal(k_s, (2, 4, 16, 16), dtype=jnp.float32)

    ema = EMA(mu)
    ema.register("w", shadow_init)

    out = jax.block_until_ready(ema("w", x))
    ref = mu * x + (1.0 - mu) * shadow_init
    assert out.shape == x.shape and out.dtype == x.dtype
    assert jnp.allclose(out, ref, atol=1e-6, rtol=1e-6)

    # Shadow state updated (second call uses the new shadow).
    out2 = jax.block_until_ready(ema("w", x))
    ref2 = mu * x + (1.0 - mu) * ref
    assert jnp.allclose(out2, ref2, atol=1e-6, rtol=1e-6)

    # 2) Larger tensor exercising the multi-block (>=2 grid steps) path.
    xb = jax.random.normal(k_x2, (4, 8, 32, 32), dtype=jnp.float32)
    sb = jax.random.normal(k_s2, (4, 8, 32, 32), dtype=jnp.float32)
    outb = jax.block_until_ready(ema_update(xb, sb, mu))
    refb = mu * xb + (1.0 - mu) * sb
    assert jnp.allclose(outb, refb, atol=1e-6, rtol=1e-6)

    # 3) Odd shape (not a multiple of 128) exercising the pad-and-slice path.
    xc = jax.random.normal(k_x3, (3, 5, 7), dtype=jnp.float32)
    sc = jax.random.normal(k_s3, (3, 5, 7), dtype=jnp.float32)
    outc = jax.block_until_ready(ema_update(xc, sc, mu))
    refc = mu * xc + (1.0 - mu) * sc
    assert outc.shape == xc.shape
    assert jnp.allclose(outc, refc, atol=1e-6, rtol=1e-6)

    print("KERNEL_OK")
</pallas_src>

<mosaic_0001>
module attributes {stable_mosaic.version = 11 : i64} {
  func.func @_ema_kernel(%arg0: i32, %arg1: memref<8x1024xf32, #tpu.memory_space<vmem>>, %arg2: memref<8x1024xf32, #tpu.memory_space<vmem>>, %arg3: memref<8x1024xf32, #tpu.memory_space<vmem>>) attributes {dimension_semantics = [#tpu.dimension_semantics<parallel>], iteration_bounds = array<i64: 1>, scalar_prefetch = 0 : i64, scratch_operands = 0 : i64, tpu.core_type = #tpu.core_type<tc>, window_params = [{transform_indices = @transform_0, window_bounds = array<i64: 8, 1024>}, {transform_indices = @transform_1, window_bounds = array<i64: 8, 1024>}, {transform_indices = @transform_2, window_bounds = array<i64: 8, 1024>}]} {
    %c0 = arith.constant 0 : index
    %c0_0 = arith.constant 0 : index
    %0 = vector.load %arg1[%c0, %c0_0] : memref<8x1024xf32, #tpu.memory_space<vmem>>, vector<8x1024xf32>
    %cst = arith.constant 0.899999976 : f32
    %1 = vector.broadcast %cst : f32 to vector<8x1024xf32>
    %2 = arith.mulf %1, %0 : vector<8x1024xf32>
    %c0_1 = arith.constant 0 : index
    %c0_2 = arith.constant 0 : index
    %3 = vector.load %arg2[%c0_1, %c0_2] : memref<8x1024xf32, #tpu.memory_space<vmem>>, vector<8x1024xf32>
    %cst_3 = arith.constant 1.000000e-01 : f32
    %4 = vector.broadcast %cst_3 : f32 to vector<8x1024xf32>
    %5 = arith.mulf %4, %3 : vector<8x1024xf32>
    %6 = arith.addf %2, %5 : vector<8x1024xf32>
    %c0_4 = arith.constant 0 : index
    %c0_5 = arith.constant 0 : index
    %7 = vector.load %arg3[%c0_4, %c0_5] : memref<8x1024xf32, #tpu.memory_space<vmem>>, vector<8x1024xf32>
    tpu.vector_store %arg3[%c0_4, %c0_5], %6 {strides = array<i32>} : memref<8x1024xf32, #tpu.memory_space<vmem>>, vector<8x1024xf32>,
    return
  }
  func.func @transform_0(%arg0: i32) -> (i32, i32) {
    %c0_i32 = arith.constant 0 : i32
    %c0_i32_0 = arith.constant 0 : i32
    return %arg0, %c0_i32 : i32, i32
  }
  func.func @transform_1(%arg0: i32) -> (i32, i32) {
    %c0_i32 = arith.constant 0 : i32
    %c0_i32_0 = arith.constant 0 : i32
    return %arg0, %c0_i32 : i32, i32
  }
  func.func @transform_2(%arg0: i32) -> (i32, i32) {
    %c0_i32 = arith.constant 0 : i32
    %c0_i32_0 = arith.constant 0 : i32
    return %arg0, %c0_i32 : i32, i32
  }
}

</mosaic_0001>

<llo_original>
// kernel: ema_update.1
$region0: #{ema_update.1}
  #allocation0 [shape = 'u32[]', space=smem, size = 0x4, offset = 0x4, fixed_abs, tag = 'smem constant byte address 0x4 - core index']
  #allocation1 [shape = 'u32[144,128]{1,0:T(1,128)}', space=vmem, size = 0x12000, scoped, tag = 'internal scratch']
  %s0 = inlined_call_operand.vmem [shape: f32[8,1024], index: 0, kind: input, shape index: {}]
  %s1 = inlined_call_operand.vmem [shape: f32[8,1024], index: 1, kind: input, shape index: {}, may-alias: {1,2}]
  %s2 = inlined_call_operand.vmem [shape: f32[8,1024], index: 2, kind: output, shape index: {}, may-alias: {1,2}]
  %s3 = sld [smem:[#allocation0]]
  $region18: #{ema_update.1} parent=0
    _
  %s5 = ssub.s32 1, %s3
  %s6 = scalar_select 0, %s5, %s3
  // Predicated region
  $region2: #{ema_update.1} parent=0 // pred_check
    _
  $region3: #{ema_update.1} parent=0 // pred_check_branch
    %8 = sbr.rel (0) target = $region5
  $region4: #{ema_update.1} parent=0 // pred_region
    _
  $region5: #{ema_update.1} parent=0 // pred_fallthru
    _
  // Predicated region
  $region6: #{ema_update.1} parent=0 // pred_check
    _
  $region7: #{ema_update.1} parent=0 // pred_check_branch
    %10 = sbr.rel (0) target = $region9
  $region8: #{ema_update.1} parent=0 // pred_region
    _
  $region9: #{ema_update.1} parent=0 // pred_fallthru
    _
  %v11 = vld [vmem:[%s0] sm:$0xff]
  %v12 = vld [vmem:[%s0 + $0x8] sm:$0xff]
  %v13 = vld [vmem:[%s0 + $0x10] sm:$0xff]
  %v14 = vld [vmem:[%s0 + $0x18] sm:$0xff]
  %v15 = vld [vmem:[%s0 + $0x20] sm:$0xff]
  %v16 = vld [vmem:[%s0 + $0x28] sm:$0xff]
  %v17 = vld [vmem:[%s0 + $0x30] sm:$0xff]
  %v18 = vld [vmem:[%s0 + $0x38] sm:$0xff]
  %v19 = vmul.f32 %v11, 0.9
  %v20 = vmul.f32 %v12, 0.9
  %v21 = vmul.f32 %v13, 0.9
  %v22 = vmul.f32 %v14, 0.9
  %v23 = vmul.f32 %v15, 0.9
  %v24 = vmul.f32 %v16, 0.9
  %v25 = vmul.f32 %v17, 0.9
  %v26 = vmul.f32 %v18, 0.9
  %v27 = vld [vmem:[%s1] sm:$0xff]
  %v28 = vld [vmem:[%s1 + $0x8] sm:$0xff]
  %v29 = vld [vmem:[%s1 + $0x10] sm:$0xff]
  %v30 = vld [vmem:[%s1 + $0x18] sm:$0xff]
  %v31 = vld [vmem:[%s1 + $0x20] sm:$0xff]
  %v32 = vld [vmem:[%s1 + $0x28] sm:$0xff]
  %v33 = vld [vmem:[%s1 + $0x30] sm:$0xff]
  %v34 = vld [vmem:[%s1 + $0x38] sm:$0xff]
  %v35 = vmul.f32 %v27, 0.1
  %v36 = vmul.f32 %v28, 0.1
  %v37 = vmul.f32 %v29, 0.1
  %v38 = vmul.f32 %v30, 0.1
  %v39 = vmul.f32 %v31, 0.1
  %v40 = vmul.f32 %v32, 0.1
  %v41 = vmul.f32 %v33, 0.1
  %v42 = vmul.f32 %v34, 0.1
  %v43 = vadd.f32 %v19, %v35
  %v44 = vadd.f32 %v20, %v36
  %v45 = vadd.f32 %v21, %v37
  %v46 = vadd.f32 %v22, %v38
  %v47 = vadd.f32 %v23, %v39
  %v48 = vadd.f32 %v24, %v40
  %v49 = vadd.f32 %v25, %v41
  %v50 = vadd.f32 %v26, %v42
  %51 = vst [vmem:[%s2] sm:$0xff] %v43
  %52 = vst [vmem:[%s2 + $0x8] sm:$0xff] %v44
  %53 = vst [vmem:[%s2 + $0x10] sm:$0xff] %v45
  %54 = vst [vmem:[%s2 + $0x18] sm:$0xff] %v46
  %55 = vst [vmem:[%s2 + $0x20] sm:$0xff] %v47
  %56 = vst [vmem:[%s2 + $0x28] sm:$0xff] %v48
  %57 = vst [vmem:[%s2 + $0x30] sm:$0xff] %v49
  %58 = vst [vmem:[%s2 + $0x38] sm:$0xff] %v50
  // Predicated region
  $region10: #{ema_update.1} parent=0 // pred_check
    _
  $region11: #{ema_update.1} parent=0 // pred_check_branch
    %60 = sbr.rel (0) target = $region13
  $region12: #{ema_update.1} parent=0 // pred_region
    _
  $region13: #{ema_update.1} parent=0 // pred_fallthru
    _
  // Predicated region
  $region14: #{ema_update.1} parent=0 // pred_check
    _
  $region15: #{ema_update.1} parent=0 // pred_check_branch
    %62 = sbr.rel (0) target = $region17
  $region16: #{ema_update.1} parent=0 // pred_region
    _
  $region17: #{ema_update.1} parent=0 // pred_fallthru
    _

</llo_original>
